<compile_context>
chip_gen: v6e
topology: v6e:2x2x1
jax: 0.10.0
libtpu: 0.0.40
codegen_flags: <defaults>
</compile_context>

<pallas_src>
import math

import jax
import jax.numpy as jnp
from jax.experimental import pallas as pl
from jax.experimental.pallas import tpu as pltpu


def _tv_loss_kernel(x_ref, row_scale_ref, lane_scale_ref, out_ref, acc_ref):
    """One grid step over a (H_pad, block_lanes) slab of the (H_pad, NC*W) image.

    x_ref          : (H_pad, BL) input block, native dtype
    row_scale_ref  : (H_pad, 1) f32, 0.1/count_v on rows < H-1, else 0
    lane_scale_ref : (1, BL)    f32, 0.1/count_h on lanes l with l%W != W-1, else 0
    out_ref        : (1, 1) f32 SMEM scalar output (written on the last step)
    acc_ref        : (H_pad, 1) f32 VMEM per-row partial sum (persists across steps)
    """
    pid = pl.program_id(0)

    @pl.when(pid == 0)
    def _init():
        acc_ref[...] = jnp.zeros_like(acc_ref)

    # Native-dtype DMA; single upcast in VMEM (v5e has no bf16 VALU, and 32-bit
    # keeps the sublane rotate on a safe layout).
    # TODO(synk): native-bf16 diff chain on v6e/v7x (see header).
    x = x_ref[...].astype(jnp.float32)
    h_pad, bl = x.shape

    # Neighbours via XLU rotates; wrap rows/lanes land on masked entries of the
    # hoisted scale masks, so no per-step iota/%/compare is needed.
    x_down = pltpu.roll(x, shift=h_pad - 1, axis=0)    # x[r+1, l]
    x_right = pltpu.roll(x, shift=bl - 1, axis=1)      # x[r, l+1]

    d = (jnp.abs(x_down - x) * row_scale_ref[...]
         + jnp.abs(x_right - x) * lane_scale_ref[...])

    # Fold the block down to a (H_pad, 1) per-row partial before touching the
    # accumulator: no block-sized running-accumulator loads/stores per step.
    acc_ref[...] += jnp.sum(d, axis=1, keepdims=True)

    @pl.when(pid == pl.num_programs(0) - 1)
    def _finalize():
        # Scales (0.1 / counts) are folded into the masks -> plain sum.
        out_ref[0, 0] = jnp.sum(acc_ref[...])


def tv_loss(img, *, block_bytes_target=4 * 1024 * 1024):
    """img: (N, C, H, W) array -> scalar float32, same math as TVLoss.forward."""
    n, c, h, w = img.shape
    nc = n * c
    assert h >= 2 and w >= 2, "TVLoss needs H >= 2 and W >= 2"

    h_pad = ((h + 7) // 8) * 8          # (8,128)-aligned sublane layout
    total_lanes = nc * w

    # Lane-dense layout: image k occupies lanes [k*W, (k+1)*W) of every row.
    x = jnp.transpose(img.reshape(nc, h, w), (1, 0, 2)).reshape(h, total_lanes)
    if h_pad != h:
        x = jnp.pad(x, ((0, h_pad - h), (0, 0)))   # zero rows, masked below

    # ---- lane-block sizing: budget against the f32 working set -------------
    budget_lanes = max(128, (block_bytes_target // (h_pad * 4)) // 128 * 128)
    lane_tile = (w * 128) // math.gcd(w, 128)       # lcm(W, 128)
    if lane_tile <= budget_lanes:
        # Blocks aligned to both the image width (exact boundary masking) and
        # the 128-lane vreg width (BlockSpec constraint).
        k = max(1, min(pl.cdiv(total_lanes, lane_tile), budget_lanes // lane_tile))
        block_lanes = k * lane_tile
    else:
        # Awkward W: lcm(W,128) alone blows the budget -> single lane block.
        # TODO(synk): H-tiling with a 1-row halo / 1-lane halo for huge inputs.
        block_lanes = pl.cdiv(total_lanes, 128) * 128
    grid_n = pl.cdiv(total_lanes, block_lanes)
    padded_lanes = grid_n * block_lanes
    if padded_lanes != total_lanes:
        # Zero padding contributes 0 to both masked sums; divisors use true NC.
        x = jnp.pad(x, ((0, 0), (0, padded_lanes - total_lanes)))

    # ---- hoisted masks (grid-invariant), with 0.1/count folded in ----------
    scale_v = 0.1 / float(nc * (h - 1) * w)
    scale_h = 0.1 / float(nc * h * (w - 1))

    row_idx = jnp.arange(h_pad, dtype=jnp.int32)
    row_scale = jnp.where(row_idx < h - 1, scale_v, 0.0).astype(jnp.float32)
    row_scale = row_scale.reshape(h_pad, 1)

    lane_idx = jnp.arange(block_lanes, dtype=jnp.int32)
    lane_keep = (lane_idx % w) != (w - 1)
    if grid_n == 1:
        # Single block: also mask pad lanes so the block-edge lane wrap (which
        # may not land on an image-boundary column here) contributes 0.
        lane_keep = jnp.logical_and(lane_keep, lane_idx < total_lanes)
    lane_scale = jnp.where(lane_keep, scale_h, 0.0).astype(jnp.float32)
    lane_scale = lane_scale.reshape(1, block_lanes)

    out = pl.pallas_call(
        _tv_loss_kernel,
        out_shape=jax.ShapeDtypeStruct((1, 1), jnp.float32),
        grid_spec=pltpu.PrefetchScalarGridSpec(
            num_scalar_prefetch=0,
            grid=(grid_n,),
            in_specs=[
                pl.BlockSpec((h_pad, block_lanes), lambda i: (0, i)),
                pl.BlockSpec((h_pad, 1), lambda i: (0, 0)),      # resident mask
                pl.BlockSpec((1, block_lanes), lambda i: (0, 0)),  # resident mask
            ],
            out_specs=pl.BlockSpec(memory_space=pltpu.SMEM),
            scratch_shapes=[pltpu.VMEM((h_pad, 1), jnp.float32)],
        ),
        compiler_params=pltpu.CompilerParams(
            dimension_semantics=("arbitrary",),   # running reduction axis
            vmem_limit_bytes=32 * 1024 * 1024,    # safe on v5e / v6e / v7x
        ),
    )(x, row_scale, lane_scale)
    return out[0, 0]


def tv_loss_ref(img):
    # Pure-JAX reference, identical to the PyTorch forward.
    dv = jnp.abs(img[:, :, :-1, :] - img[:, :, 1:, :])
    dh = jnp.abs(img[:, :, :, :-1] - img[:, :, :, 1:])
    return 0.1 * (jnp.mean(dv) + jnp.mean(dh))


if __name__ == "__main__":
    key = jax.random.PRNGKey(0)
    k1, k2, k3, k4, k5 = jax.random.split(key, 5)

    # Primary case from the spec: N=2, C=4, H=W=16 (single-block grid).
    img = jax.random.normal(k1, (2, 4, 16, 16), dtype=jnp.float32)
    out = jax.block_until_ready(tv_loss(img))
    ref = jax.block_until_ready(tv_loss_ref(img))
    assert jnp.allclose(out, ref, rtol=1e-5, atol=1e-6), (out, ref)

    # Small block budget -> grid of 2 steps: cross-step accumulator + resident masks.
    img2 = jax.random.normal(k2, (2, 4, 32, 32), dtype=jnp.float32)
    out2 = jax.block_until_ready(tv_loss(img2, block_bytes_target=16 * 1024))
    ref2 = jax.block_until_ready(tv_loss_ref(img2))
    assert jnp.allclose(out2, ref2, rtol=1e-5, atol=1e-6), (out2, ref2)

    # NC*W not a multiple of the lane tile and W not a power of two -> lane padding.
    img3 = jax.random.normal(k3, (3, 5, 8, 24), dtype=jnp.float32)
    out3 = jax.block_until_ready(tv_loss(img3))
    ref3 = jax.block_until_ready(tv_loss_ref(img3))
    assert jnp.allclose(out3, ref3, rtol=1e-5, atol=1e-6), (out3, ref3)

    # H not a multiple of 8 -> sublane zero-padding path (true-H masks/divisors).
    img4 = jax.random.normal(k4, (2, 3, 13, 20), dtype=jnp.float32)
    out4 = jax.block_until_ready(tv_loss(img4))
    ref4 = jax.block_until_ready(tv_loss_ref(img4))
    assert jnp.allclose(out4, ref4, rtol=1e-5, atol=1e-6), (out4, ref4)

    # Awkward W with a tiny budget -> lcm(W,128) fallback (single lane block).
    img5 = jax.random.normal(k5, (2, 2, 16, 50), dtype=jnp.float32)
    out5 = jax.block_until_ready(tv_loss(img5, block_bytes_target=8 * 1024))
    ref5 = jax.block_until_ready(tv_loss_ref(img5))
    assert jnp.allclose(out5, ref5, rtol=1e-5, atol=1e-6), (out5, ref5)

    # Native bf16 DMA with in-kernel f32 accumulation.
    img6 = img.astype(jnp.bfloat16)
    out6 = jax.block_until_ready(tv_loss(img6))
    ref6 = jax.block_until_ready(tv_loss_ref(img6.astype(jnp.float32)))
    assert jnp.allclose(out6, ref6, rtol=1e-4, atol=1e-5), (out6, ref6)

    print("KERNEL_OK")
</pallas_src>

<mosaic_0001>
module attributes {stable_mosaic.version = 11 : i64} {
  func.func @_tv_loss_kernel(%arg0: i32, %arg1: memref<16x128xf32, #tpu.memory_space<vmem>>, %arg2: memref<16x1xf32, #tpu.memory_space<vmem>>, %arg3: memref<1x128xf32, #tpu.memory_space<vmem>>, %arg4: memref<1x1xf32, #tpu.memory_space<smem>>, %arg5: memref<16x1xf32, #tpu.memory_space<vmem>>) attributes {dimension_semantics = [#tpu.dimension_semantics<arbitrary>], iteration_bounds = array<i64: 1>, scalar_prefetch = 0 : i64, scratch_operands = 1 : i64, tpu.core_type = #tpu.core_type<tc>, window_params = [{transform_indices = @transform_0, window_bounds = array<i64: 16, 128>}, {pipeline_mode = #tpu.pipeline_mode<synchronous>, transform_indices = @transform_1, window_bounds = array<i64: 16, 1>}, {pipeline_mode = #tpu.pipeline_mode<synchronous>, transform_indices = @transform_2, window_bounds = array<i64: 1, 128>}, {transform_indices = @transform_3, window_bounds = array<i64: 1, 1>}]} {
    %c0_i32 = arith.constant 0 : i32
    %0 = arith.cmpi eq, %arg0, %c0_i32 : i32
    %1 = arith.extui %0 : i1 to i32
    %c0_i32_0 = arith.constant 0 : i32
    %2 = arith.cmpi ne, %1, %c0_i32_0 : i32
    scf.if %2 {
      %cst_12 = arith.constant 0.000000e+00 : f32
      %25 = vector.broadcast %cst_12 : f32 to vector<16x1xf32>
      %c0_13 = arith.constant 0 : index
      %c0_14 = arith.constant 0 : index
      %26 = vector.load %arg5[%c0_13, %c0_14] : memref<16x1xf32, #tpu.memory_space<vmem>>, vector<16x1xf32>
      tpu.vector_store %arg5[%c0_13, %c0_14], %25 {strides = array<i32>} : memref<16x1xf32, #tpu.memory_space<vmem>>, vector<16x1xf32>,
    } else {
    }
    %c0 = arith.constant 0 : index
    %c0_1 = arith.constant 0 : index
    %3 = vector.load %arg1[%c0, %c0_1] : memref<16x128xf32, #tpu.memory_space<vmem>>, vector<16x128xf32>
    %c15_i32 = arith.constant 15 : i32
    %4 = tpu.dynamic_rotate %3 by %c15_i32 dim 0 : vector<16x128xf32>, i32 -> vector<16x128xf32>
    %c127_i32 = arith.constant 127 : i32
    %5 = tpu.dynamic_rotate %3 by %c127_i32 dim 1 : vector<16x128xf32>, i32 -> vector<16x128xf32>
    %6 = arith.subf %4, %3 : vector<16x128xf32>
    %7 = math.absf %6 : vector<16x128xf32>
    %c0_2 = arith.constant 0 : index
    %c0_3 = arith.constant 0 : index
    %8 = vector.load %arg2[%c0_2, %c0_3] : memref<16x1xf32, #tpu.memory_space<vmem>>, vector<16x1xf32>
    %9 = vector.broadcast %8 : vector<16x1xf32> to vector<16x128xf32>
    %10 = arith.mulf %7, %9 : vector<16x128xf32>
    %11 = arith.subf %5, %3 : vector<16x128xf32>
    %12 = math.absf %11 : vector<16x128xf32>
    %c0_4 = arith.constant 0 : index
    %c0_5 = arith.constant 0 : index
    %13 = vector.load %arg3[%c0_4, %c0_5] : memref<1x128xf32, #tpu.memory_space<vmem>>, vector<1x128xf32>
    %14 = vector.broadcast %13 : vector<1x128xf32> to vector<16x128xf32>
    %15 = arith.mulf %12, %14 : vector<16x128xf32>
    %16 = arith.addf %10, %15 : vector<16x128xf32>
    %c0_6 = arith.constant 0 : index
    %c0_7 = arith.constant 0 : index
    %17 = vector.load %arg5[%c0_6, %c0_7] : memref<16x1xf32, #tpu.memory_space<vmem>>, vector<16x1xf32>
    %cst = arith.constant dense<0.000000e+00> : vector<16xf32>
    %18 = vector.multi_reduction <add>, %16, %cst [1] : vector<16x128xf32> to vector<16xf32>
    %19 = vector.shape_cast %18 : vector<16xf32> to vector<16x1xf32>
    %20 = arith.addf %17, %19 : vector<16x1xf32>
    %c0_8 = arith.constant 0 : index
    %c0_9 = arith.constant 0 : index
    %21 = vector.load %arg5[%c0_8, %c0_9] : memref<16x1xf32, #tpu.memory_space<vmem>>, vector<16x1xf32>
    tpu.vector_store %arg5[%c0_8, %c0_9], %20 {strides = array<i32>} : memref<16x1xf32, #tpu.memory_space<vmem>>, vector<16x1xf32>,
    %c0_i32_10 = arith.constant 0 : i32
    %22 = arith.cmpi eq, %arg0, %c0_i32_10 : i32
    %23 = arith.extui %22 : i1 to i32
    %c0_i32_11 = arith.constant 0 : i32
    %24 = arith.cmpi ne, %23, %c0_i32_11 : i32
    scf.if %24 {
      %c0_12 = arith.constant 0 : index
      %c0_13 = arith.constant 0 : index
      %25 = vector.load %arg5[%c0_12, %c0_13] : memref<16x1xf32, #tpu.memory_space<vmem>>, vector<16x1xf32>
      %26 = vector.shape_cast %25 : vector<16x1xf32> to vector<1x16x1xf32>
      %cst_14 = arith.constant dense<0.000000e+00> : vector<1xf32>
      %27 = vector.multi_reduction <add>, %26, %cst_14 [1, 2] : vector<1x16x1xf32> to vector<1xf32>
      %28 = vector.shape_cast %27 : vector<1xf32> to vector<1x1x1xf32>
      %29 = vector.extract %28[0, 0, 0] : f32 from vector<1x1x1xf32>
      %c0_15 = arith.constant 0 : index
      %c0_16 = arith.constant 0 : index
      %30 = memref.load %arg4[%c0_15, %c0_16] : memref<1x1xf32, #tpu.memory_space<smem>>
      memref.store %29, %arg4[%c0_15, %c0_16] : memref<1x1xf32, #tpu.memory_space<smem>>
    } else {
    }
    return
  }
  func.func @transform_0(%arg0: i32) -> (i32, i32) {
    %c0_i32 = arith.constant 0 : i32
    %c0_i32_0 = arith.constant 0 : i32
    return %c0_i32, %arg0 : i32, i32
  }
  func.func @transform_1(%arg0: i32) -> (i32, i32) {
    %c0_i32 = arith.constant 0 : i32
    %c0_i32_0 = arith.constant 0 : i32
    %c0_i32_1 = arith.constant 0 : i32
    return %c0_i32, %c0_i32_0 : i32, i32
  }
  func.func @transform_2(%arg0: i32) -> (i32, i32) {
    %c0_i32 = arith.constant 0 : i32
    %c0_i32_0 = arith.constant 0 : i32
    %c0_i32_1 = arith.constant 0 : i32
    return %c0_i32, %c0_i32_0 : i32, i32
  }
  func.func @transform_3(%arg0: i32) -> (i32, i32) {
    %c0_i32 = arith.constant 0 : i32
    %c0_i32_0 = arith.constant 0 : i32
    %c0_i32_1 = arith.constant 0 : i32
    return %c0_i32, %c0_i32_0 : i32, i32
  }
}

</mosaic_0001>

<llo_original>
// kernel: tpu_custom_call.1
$region0: #{tpu_custom_call.1}
  #allocation0 [shape = 'u32[]', space=smem, size = 0x4, offset = 0x4, fixed_abs, tag = 'smem constant byte address 0x4 - core index']
  #allocation1 [shape = 'u32[144,128]{1,0:T(1,128)}', space=vmem, size = 0x12000, scoped, tag = 'internal scratch']
  #allocation2 [shape = 'f32[16,1]{1,0:T(8,128)}', space=vmem, size = 0x2000, scoped, tag = 'scratch operand']
  %s0 = inlined_call_operand.vmem [shape: f32[16,128], index: 0, kind: input, shape index: {}]
  %s1 = inlined_call_operand.vmem [shape: f32[16,1], index: 1, kind: input, shape index: {}]
  %s2 = inlined_call_operand.vmem [shape: f32[1,128], index: 2, kind: input, shape index: {}]
  %s3 = inlined_call_operand.hbm [shape: f32[1,1], index: 3, kind: output, shape index: {}]
  %s4 = sld [smem:[#allocation0]]
  $region30: #{tpu_custom_call.1} parent=0
    _
  %s6 = ssub.s32 1, %s4
  %s7 = scalar_select 0, %s6, %s4
  $region1: #{tpu_custom_call.1} parent=0
    #allocation3 [shape = 'u8[512]{0}', space=smem, size = 0x200, scoped, tag = 'output window, operand 0, single buffered']
    #allocation4 [shape = 's32[1]{0}', space=sflag, size = 0x4, scoped, tag = 'scoped memory for tpu_custom_call.1']
    %8 = vsyncpa [#allocation4], 0
    // Predicated region
    $region2: #{tpu_custom_call.1} parent=1 // pred_check
      _
    $region3: #{tpu_custom_call.1} parent=1 // pred_check_branch
      %10 = sbr.rel (0) target = $region5
    $region4: #{tpu_custom_call.1} parent=1 // pred_region
      _
    $region5: #{tpu_custom_call.1} parent=1 // pred_fallthru
      _
    // Predicated region
    $region6: #{tpu_custom_call.1} parent=1 // pred_check
      _
    $region7: #{tpu_custom_call.1} parent=1 // pred_check_branch
      %12 = sbr.rel (0) target = $region9
    $region8: #{tpu_custom_call.1} parent=1 // pred_region
      _
    $region9: #{tpu_custom_call.1} parent=1 // pred_fallthru
      _
    // Predicated region
    $region10: #{tpu_custom_call.1} parent=1 // pred_check
      _
    $region11: #{tpu_custom_call.1} parent=1 // pred_check_branch
      %14 = sbr.rel (0) target = $region13
    $region12: #{tpu_custom_call.1} parent=1 // pred_region
      _
    $region13: #{tpu_custom_call.1} parent=1 // pred_fallthru
      _
    %p15 = scmp.eq.s32.totalorder 0, 0
    // Predicated region
    $region14: #{tpu_custom_call.1} parent=1 // pred_check
      %p16 = pneg %p15
    $region15: #{tpu_custom_call.1} parent=1 // pred_check_branch
      %18 = sbr.rel (%p16) target = $region17
    $region16: #{tpu_custom_call.1} parent=1 // pred_region
      %vm19 = vcmask 7168
      %20 = vst.msk [vmem:[#allocation2] sm:$0xff] %vm19, 0.0
      %21 = vst.msk [vmem:[#allocation2 + $0x8] sm:$0xff] %vm19, 0.0
    $region17: #{tpu_custom_call.1} parent=1 // pred_fallthru
      _
    %v22 = vld [vmem:[%s0] sm:$0xff]
    %v23 = vld [vmem:[%s0 + $0x8] sm:$0xff]
    %v24 = vrot.slane %v22, 1
    %v25 = vrot.slane %v23, 1
    %v26 = vlaneseq
    %v27 = vshrl.u32 %v26, 7
    %vm28 = vcmp.lt.s32.totalorder %v27, 7
    %v29 = vsel %vm28, %v24, %v25
    %v30 = vsel %vm28, %v25, %v24
    %31 = vrot.lane.b32.xlu0 %v22, 127
    %v32 = vpop.permute.xlu0 %31
    %33 = vrot.lane.b32.xlu0 %v23, 127
    %v34 = vpop.permute.xlu0 %33
    %v35 = vsub.f32 %v29, %v22
    %v36 = vsub.f32 %v30, %v23
    %v37 = vand.u32 2147483647, %v35
    %v38 = vand.u32 2147483647, %v36
    %v39 = vld [vmem:[%s1] sm:$0xff]
    %v40 = vld [vmem:[%s1 + $0x8] sm:$0xff]
    %42 = vset.pattern.permute.xlu0 0
    %43 = vperm.xlu0 %42, %v39
    %v44 = vpop.permute.xlu0 %43
    %47 = vset.pattern.permute.xlu0 0
    %48 = vperm.xlu0 %47, %v40
    %v49 = vpop.permute.xlu0 %48
    %v51 = vmul.f32 %v37, %v44
    %v52 = vmul.f32 %v38, %v49
    %v53 = vsub.f32 %v32, %v22
    %v54 = vsub.f32 %v34, %v23
    %v55 = vand.u32 2147483647, %v53
    %v56 = vand.u32 2147483647, %v54
    %v57 = vld [vmem:[%s2] sm:$0x1]
    %v59 = vlaneseq
    %v60 = vshrl.u32 %v59, 7
    %v61 = vsub.s32 0, %v60
    %v62 = vrot.slane %v57, %v61
    %v64 = vmul.f32 %v55, %v62
    %v65 = vmul.f32 %v56, %v62
    %v66 = vadd.f32 %v51, %v64
    %v67 = vadd.f32 %v52, %v65
    %v68 = vld [vmem:[#allocation2] sm:$0xff]
    %v69 = vld [vmem:[#allocation2 + $0x8] sm:$0xff]
    %70 = vadd.xlane.f32.xlu0 %v66
    %v71 = vpop.xlane.xlu0 %70
    %72 = vadd.xlane.f32.xlu0 %v67
    %v73 = vpop.xlane.xlu0 %72
    %v74 = vadd.f32 %v68, %v71
    %v75 = vadd.f32 %v69, %v73
    %vm76 = vcmask 7168
    %77 = vst.msk [vmem:[#allocation2] sm:$0xff] %vm76, %v74
    %78 = vst.msk [vmem:[#allocation2 + $0x8] sm:$0xff] %vm76, %v75
    // Predicated region
    $region18: #{tpu_custom_call.1} parent=1 // pred_check
      %p79 = pneg %p15
    $region19: #{tpu_custom_call.1} parent=1 // pred_check_branch
      %81 = sbr.rel (%p79) target = $region21
    $region20: #{tpu_custom_call.1} parent=1 // pred_region
      %v82 = vld [vmem:[#allocation2] sm:$0xff]
      %v83 = vld [vmem:[#allocation2 + $0x8] sm:$0xff]
      %v84 = vsel %vm76, %v82, 0.0
      %v85 = vsel %vm76, %v83, 0.0
      %v86 = vadd.f32 %v84, %v85
      %87 = vadd.xlane.f32.xlu0 %v86
      %v88 = vpop.xlane.xlu0 %87
      %v89 = vrot.slane %v88, 4
      %v90 = vadd.f32 %v88, %v89
      %v91 = vrot.slane %v90, 2
      %v92 = vadd.f32 %v90, %v91
      %v93 = vrot.slane %v92, 1
      %v94 = vadd.f32 %v92, %v93
      %s95 = vtos %v94
      %s96 = scalar_lea.smem [#allocation3], 0
      %97 = sst [smem:[%s96]] %s95
    $region21: #{tpu_custom_call.1} parent=1 // pred_fallthru
      _
    // Predicated region
    $region22: #{tpu_custom_call.1} parent=1 // pred_check
      _
    $region23: #{tpu_custom_call.1} parent=1 // pred_check_branch
      %99 = sbr.rel (0) target = $region25
    $region24: #{tpu_custom_call.1} parent=1 // pred_region
      %s101 = ssub.s32 16, 16
      %102 = vsyncadd [#allocation4], %s101
      %105 = dma.smem_to_hbm [#allocation3], 16, %s3, [#allocation4]
    $region25: #{tpu_custom_call.1} parent=1 // pred_fallthru
      _
    // Predicated region
    $region26: #{tpu_custom_call.1} parent=1 // pred_check
      _
    $region27: #{tpu_custom_call.1} parent=1 // pred_check_branch
      %107 = sbr.rel (0) target = $region29
    $region28: #{tpu_custom_call.1} parent=1 // pred_region
      %108 = dma.done [#allocation4], 16
    $region29: #{tpu_custom_call.1} parent=1 // pred_fallthru
      _
    %109 = sfence
    %110 = vsyncpa [#allocation4], 1

</llo_original>
